<compile_context>
chip_gen: v7x
topology: tpu7x:2x2x1
jax: 0.10.0
libtpu: 0.0.40
codegen_flags: <defaults>
</compile_context>

<pallas_src>
import functools

import jax
import jax.numpy as jnp
from jax.experimental import pallas as pl
from jax.experimental.pallas import tpu as pltpu

_LANE = 128      # vreg lane width
_SUBLANE = 8     # f32 sublane count


def _round_up(n, m):
    return ((n + m - 1) // m) * m


def _mlp_kernel(x_ref,
                w1_ref, b1_ref,
                w2_ref, b2_ref,
                w3_ref, b3_ref,
                w4_ref, b4_ref,
                o_ref):
    """One batch tile of the MLP: F_pad -> 128 -> 64 -> 32 -> 128 (padded 1)."""
    cdt = w1_ref.dtype          # matmul operand dtype (bf16 by default)
    x = x_ref[...]              # (TB, F_pad), already cast to cdt in the wrapper

    # Linear(input_size, 128) + ReLU       (Dropout(0.3) is identity at inference)
    h1 = jnp.dot(x, w1_ref[...], preferred_element_type=jnp.float32) + b1_ref[...]
    h1 = jnp.maximum(h1, 0.0)

    # Linear(128, 64) + ReLU               (Dropout(0.2) is identity at inference)
    h2 = jnp.dot(h1.astype(cdt), w2_ref[...], preferred_element_type=jnp.float32) + b2_ref[...]
    h2 = jnp.maximum(h2, 0.0)

    # Linear(64, 32) + ReLU
    h3 = jnp.dot(h2.astype(cdt), w3_ref[...], preferred_element_type=jnp.float32) + b3_ref[...]
    h3 = jnp.maximum(h3, 0.0)

    # Linear(32, 1) + Sigmoid.  w4/b4 are zero-padded to 128 output lanes so the
    # final store is lane-dense (unmasked vst, dense writeback DMA); column 0 holds
    # the real logit, the other 127 columns are sigmoid(0)=0.5 garbage sliced off
    # in the wrapper.
    logits = jnp.dot(h3.astype(cdt), w4_ref[...], preferred_element_type=jnp.float32) + b4_ref[...]
    o_ref[...] = jax.nn.sigmoid(logits).astype(o_ref.dtype)


@functools.partial(jax.jit, static_argnames=("block_batch", "compute_dtype"))
def stock_predictor_forward(x, params, *, block_batch=512, compute_dtype=jnp.bfloat16):
    """Inference forward of StockPredictor.

    x: [B, input_size] float32
    params: dict w1..w4 ([in, out] layout), b1..b4 ([1, out]) in float32.
    Returns [B, 1] float32 probabilities.
    """
    B, F = x.shape
    cdt = compute_dtype

    # Pad features to a full 128-lane multiple; pick a sublane-aligned batch tile.
    f_pad = _round_up(max(F, 1), _LANE)
    tb = min(_round_up(block_batch, _SUBLANE), _round_up(B, _SUBLANE))
    b_pad = _round_up(B, tb)

    # Zero-padding rows/cols of x and rows of w1 does not perturb real outputs.
    x_p = jnp.zeros((b_pad, f_pad), cdt).at[:B, :F].set(x.astype(cdt))
    w1_p = jnp.zeros((f_pad, 128), cdt).at[:F, :].set(params["w1"].astype(cdt))
    w2 = params["w2"].astype(cdt)
    w3 = params["w3"].astype(cdt)
    # Pad the last layer to 128 output lanes (zeros) for a lane-dense output block.
    w4_p = jnp.zeros((32, _LANE), cdt).at[:, :1].set(params["w4"].astype(cdt))

    # Biases stay f32: the bias/ReLU/sigmoid epilogue runs in f32.
    b1 = params["b1"].astype(jnp.float32)
    b2 = params["b2"].astype(jnp.float32)
    b3 = params["b3"].astype(jnp.float32)
    b4_p = jnp.zeros((1, _LANE), jnp.float32).at[:, :1].set(params["b4"].astype(jnp.float32))

    # Weights/biases: full-array blocks with a constant index_map -> VMEM-resident
    # across all grid steps; only x / out are pipelined per batch tile.
    const = lambda a: pl.BlockSpec(a.shape, lambda i: (0, 0), memory_space=pltpu.VMEM)

    out = pl.pallas_call(
        _mlp_kernel,
        grid=(b_pad // tb,),
        out_shape=jax.ShapeDtypeStruct((b_pad, _LANE), jnp.float32),
        in_specs=[
            pl.BlockSpec((tb, f_pad), lambda i: (i, 0), memory_space=pltpu.VMEM),
            const(w1_p), const(b1),
            const(w2), const(b2),
            const(w3), const(b3),
            const(w4_p), const(b4_p),
        ],
        out_specs=pl.BlockSpec((tb, _LANE), lambda i: (i, 0), memory_space=pltpu.VMEM),
        compiler_params=pltpu.CompilerParams(
            dimension_semantics=("parallel",),        # megacore sharding of batch tiles (v7x)
            vmem_limit_bytes=32 * 1024 * 1024,        # explicit cap; safe on v7x's 64 MiB
        ),
    )(x_p, w1_p, b1, w2, b2, w3, b3, w4_p, b4_p)

    return out[:B, 0:1]


def init_params(input_size, key):
    """Deterministic parameter init mimicking nn.Linear shapes.

    PyTorch Linear(in, out).weight is [out, in]; we store the transpose [in, out]
    so the kernel computes x @ W directly. Biases are 2D [1, out].
    """
    sizes = [(input_size, 128), (128, 64), (64, 32), (32, 1)]
    params = {}
    for i, (fan_in, fan_out) in enumerate(sizes, start=1):
        key, kw, kb = jax.random.split(key, 3)
        bound = 1.0 / jnp.sqrt(fan_in)
        params[f"w{i}"] = jax.random.uniform(
            kw, (fan_in, fan_out), jnp.float32, minval=-bound, maxval=bound)
        params[f"b{i}"] = jax.random.uniform(
            kb, (1, fan_out), jnp.float32, minval=-bound, maxval=bound)
    return params


def reference_forward(x, params, compute_dtype=jnp.bfloat16):
    """Pure-JAX reference with matching matmul precision (dropout = identity)."""
    def mm(a, w):
        return jnp.dot(a.astype(compute_dtype), w.astype(compute_dtype),
                       preferred_element_type=jnp.float32)
    h = jnp.maximum(mm(x, params["w1"]) + params["b1"], 0.0)
    h = jnp.maximum(mm(h, params["w2"]) + params["b2"], 0.0)
    h = jnp.maximum(mm(h, params["w3"]) + params["b3"], 0.0)
    return jax.nn.sigmoid(mm(h, params["w4"]) + params["b4"])


if __name__ == "__main__":
    key = jax.random.PRNGKey(0)
    key, kx, kp = jax.random.split(key, 3)

    batch, input_size = 8, 32
    x = jax.random.normal(kx, (batch, input_size), jnp.float32)
    params = init_params(input_size, kp)

    out = jax.block_until_ready(stock_predictor_forward(x, params))
    assert out.shape == (batch, 1), out.shape

    # Precision-matched reference (bf16 matmuls, f32 epilogue) -> tight tolerance.
    ref_bf16 = reference_forward(x, params, compute_dtype=jnp.bfloat16)
    assert jnp.allclose(out, ref_bf16, atol=2e-3, rtol=2e-3), (out, ref_bf16)

    # Full-f32 reference -> semantics preserved within bf16 matmul error.
    ref_f32 = reference_forward(x, params, compute_dtype=jnp.float32)
    assert jnp.allclose(out, ref_f32, atol=3e-2, rtol=0.0), (out, ref_f32)

    print("KERNEL_OK")
</pallas_src>

<mosaic_0001>
module attributes {stable_mosaic.version = 11 : i64} {
  func.func @_mlp_kernel(%arg0: i32, %arg1: memref<8x128xbf16, #tpu.memory_space<vmem>>, %arg2: memref<128x128xbf16, #tpu.memory_space<vmem>>, %arg3: memref<1x128xf32, #tpu.memory_space<vmem>>, %arg4: memref<128x64xbf16, #tpu.memory_space<vmem>>, %arg5: memref<1x64xf32, #tpu.memory_space<vmem>>, %arg6: memref<64x32xbf16, #tpu.memory_space<vmem>>, %arg7: memref<1x32xf32, #tpu.memory_space<vmem>>, %arg8: memref<32x128xbf16, #tpu.memory_space<vmem>>, %arg9: memref<1x128xf32, #tpu.memory_space<vmem>>, %arg10: memref<8x128xf32, #tpu.memory_space<vmem>>) attributes {dimension_semantics = [#tpu.dimension_semantics<parallel>], iteration_bounds = array<i64: 1>, scalar_prefetch = 0 : i64, scratch_operands = 0 : i64, tpu.core_type = #tpu.core_type<tc>, window_params = [{transform_indices = @transform_0, window_bounds = array<i64: 8, 128>}, {pipeline_mode = #tpu.pipeline_mode<synchronous>, transform_indices = @transform_1, window_bounds = array<i64: 128, 128>}, {pipeline_mode = #tpu.pipeline_mode<synchronous>, transform_indices = @transform_2, window_bounds = array<i64: 1, 128>}, {pipeline_mode = #tpu.pipeline_mode<synchronous>, transform_indices = @transform_3, window_bounds = array<i64: 128, 64>}, {pipeline_mode = #tpu.pipeline_mode<synchronous>, transform_indices = @transform_4, window_bounds = array<i64: 1, 64>}, {pipeline_mode = #tpu.pipeline_mode<synchronous>, transform_indices = @transform_5, window_bounds = array<i64: 64, 32>}, {pipeline_mode = #tpu.pipeline_mode<synchronous>, transform_indices = @transform_6, window_bounds = array<i64: 1, 32>}, {pipeline_mode = #tpu.pipeline_mode<synchronous>, transform_indices = @transform_7, window_bounds = array<i64: 32, 128>}, {pipeline_mode = #tpu.pipeline_mode<synchronous>, transform_indices = @transform_8, window_bounds = array<i64: 1, 128>}, {transform_indices = @transform_9, window_bounds = array<i64: 8, 128>}]} {
    %c0 = arith.constant 0 : index
    %c0_0 = arith.constant 0 : index
    %0 = vector.load %arg1[%c0, %c0_0] : memref<8x128xbf16, #tpu.memory_space<vmem>>, vector<8x128xbf16>
    %c0_1 = arith.constant 0 : index
    %c0_2 = arith.constant 0 : index
    %1 = vector.load %arg2[%c0_1, %c0_2] : memref<128x128xbf16, #tpu.memory_space<vmem>>, vector<128x128xbf16>
    %cst = arith.constant dense<0.000000e+00> : vector<8x128xf32>
    %2 = tpu.matmul %0, %1, %cst {dimension_numbers = #tpu.dot_dimension_numbers<[1], [0], [0], [1], [0, 0, 1, 1], [], []>} : vector<8x128xbf16>, vector<128x128xbf16>, vector<8x128xf32> -> vector<8x128xf32>
    %c0_3 = arith.constant 0 : index
    %c0_4 = arith.constant 0 : index
    %3 = vector.load %arg3[%c0_3, %c0_4] : memref<1x128xf32, #tpu.memory_space<vmem>>, vector<1x128xf32>
    %4 = vector.broadcast %3 : vector<1x128xf32> to vector<8x128xf32>
    %5 = arith.addf %2, %4 : vector<8x128xf32>
    %cst_5 = arith.constant 0.000000e+00 : f32
    %6 = vector.broadcast %cst_5 : f32 to vector<8x128xf32>
    %7 = arith.maximumf %5, %6 : vector<8x128xf32>
    %8 = arith.truncf %7 : vector<8x128xf32> to vector<8x128xbf16>
    %c0_6 = arith.constant 0 : index
    %c0_7 = arith.constant 0 : index
    %9 = vector.load %arg4[%c0_6, %c0_7] : memref<128x64xbf16, #tpu.memory_space<vmem>>, vector<128x64xbf16>
    %cst_8 = arith.constant dense<0.000000e+00> : vector<8x64xf32>
    %10 = tpu.matmul %8, %9, %cst_8 {dimension_numbers = #tpu.dot_dimension_numbers<[1], [0], [0], [1], [0, 0, 1, 1], [], []>} : vector<8x128xbf16>, vector<128x64xbf16>, vector<8x64xf32> -> vector<8x64xf32>
    %c0_9 = arith.constant 0 : index
    %c0_10 = arith.constant 0 : index
    %11 = vector.load %arg5[%c0_9, %c0_10] : memref<1x64xf32, #tpu.memory_space<vmem>>, vector<1x64xf32>
    %12 = vector.broadcast %11 : vector<1x64xf32> to vector<8x64xf32>
    %13 = arith.addf %10, %12 : vector<8x64xf32>
    %cst_11 = arith.constant 0.000000e+00 : f32
    %14 = vector.broadcast %cst_11 : f32 to vector<8x64xf32>
    %15 = arith.maximumf %13, %14 : vector<8x64xf32>
    %16 = arith.truncf %15 : vector<8x64xf32> to vector<8x64xbf16>
    %c0_12 = arith.constant 0 : index
    %c0_13 = arith.constant 0 : index
    %17 = vector.load %arg6[%c0_12, %c0_13] : memref<64x32xbf16, #tpu.memory_space<vmem>>, vector<64x32xbf16>
    %cst_14 = arith.constant dense<0.000000e+00> : vector<8x32xf32>
    %18 = tpu.matmul %16, %17, %cst_14 {dimension_numbers = #tpu.dot_dimension_numbers<[1], [0], [0], [1], [0, 0, 1, 1], [], []>} : vector<8x64xbf16>, vector<64x32xbf16>, vector<8x32xf32> -> vector<8x32xf32>
    %c0_15 = arith.constant 0 : index
    %c0_16 = arith.constant 0 : index
    %19 = vector.load %arg7[%c0_15, %c0_16] : memref<1x32xf32, #tpu.memory_space<vmem>>, vector<1x32xf32>
    %20 = vector.broadcast %19 : vector<1x32xf32> to vector<8x32xf32>
    %21 = arith.addf %18, %20 : vector<8x32xf32>
    %cst_17 = arith.constant 0.000000e+00 : f32
    %22 = vector.broadcast %cst_17 : f32 to vector<8x32xf32>
    %23 = arith.maximumf %21, %22 : vector<8x32xf32>
    %24 = arith.truncf %23 : vector<8x32xf32> to vector<8x32xbf16>
    %c0_18 = arith.constant 0 : index
    %c0_19 = arith.constant 0 : index
    %25 = vector.load %arg8[%c0_18, %c0_19] : memref<32x128xbf16, #tpu.memory_space<vmem>>, vector<32x128xbf16>
    %cst_20 = arith.constant dense<0.000000e+00> : vector<8x128xf32>
    %26 = tpu.matmul %24, %25, %cst_20 {dimension_numbers = #tpu.dot_dimension_numbers<[1], [0], [0], [1], [0, 0, 1, 1], [], []>} : vector<8x32xbf16>, vector<32x128xbf16>, vector<8x128xf32> -> vector<8x128xf32>
    %c0_21 = arith.constant 0 : index
    %c0_22 = arith.constant 0 : index
    %27 = vector.load %arg9[%c0_21, %c0_22] : memref<1x128xf32, #tpu.memory_space<vmem>>, vector<1x128xf32>
    %28 = vector.broadcast %27 : vector<1x128xf32> to vector<8x128xf32>
    %29 = arith.addf %26, %28 : vector<8x128xf32>
    %30 = arith.negf %29 : vector<8x128xf32>
    %31 = math.exp %30 : vector<8x128xf32>
    %cst_23 = arith.constant 1.000000e+00 : f32
    %32 = vector.broadcast %cst_23 : f32 to vector<8x128xf32>
    %33 = arith.addf %32, %31 : vector<8x128xf32>
    %34 = arith.divf %32, %33 : vector<8x128xf32>
    %c0_24 = arith.constant 0 : index
    %c0_25 = arith.constant 0 : index
    %35 = vector.load %arg10[%c0_24, %c0_25] : memref<8x128xf32, #tpu.memory_space<vmem>>, vector<8x128xf32>
    tpu.vector_store %arg10[%c0_24, %c0_25], %34 {strides = array<i32>} : memref<8x128xf32, #tpu.memory_space<vmem>>, vector<8x128xf32>,
    return
  }
  func.func @transform_0(%arg0: i32) -> (i32, i32) {
    %c0_i32 = arith.constant 0 : i32
    %c0_i32_0 = arith.constant 0 : i32
    return %arg0, %c0_i32 : i32, i32
  }
  func.func @transform_1(%arg0: i32) -> (i32, i32) {
    %c0_i32 = arith.constant 0 : i32
    %c0_i32_0 = arith.constant 0 : i32
    %c0_i32_1 = arith.constant 0 : i32
    return %c0_i32, %c0_i32_0 : i32, i32
  }
  func.func @transform_2(%arg0: i32) -> (i32, i32) {
    %c0_i32 = arith.constant 0 : i32
    %c0_i32_0 = arith.constant 0 : i32
    %c0_i32_1 = arith.constant 0 : i32
    return %c0_i32, %c0_i32_0 : i32, i32
  }
  func.func @transform_3(%arg0: i32) -> (i32, i32) {
    %c0_i32 = arith.constant 0 : i32
    %c0_i32_0 = arith.constant 0 : i32
    %c0_i32_1 = arith.constant 0 : i32
    return %c0_i32, %c0_i32_0 : i32, i32
  }
  func.func @transform_4(%arg0: i32) -> (i32, i32) {
    %c0_i32 = arith.constant 0 : i32
    %c0_i32_0 = arith.constant 0 : i32
    %c0_i32_1 = arith.constant 0 : i32
    return %c0_i32, %c0_i32_0 : i32, i32
  }
  func.func @transform_5(%arg0: i32) -> (i32, i32) {
    %c0_i32 = arith.constant 0 : i32
    %c0_i32_0 = arith.constant 0 : i32
    %c0_i32_1 = arith.constant 0 : i32
    return %c0_i32, %c0_i32_0 : i32, i32
  }
  func.func @transform_6(%arg0: i32) -> (i32, i32) {
    %c0_i32 = arith.constant 0 : i32
    %c0_i32_0 = arith.constant 0 : i32
    %c0_i32_1 = arith.constant 0 : i32
    return %c0_i32, %c0_i32_0 : i32, i32
  }
  func.func @transform_7(%arg0: i32) -> (i32, i32) {
    %c0_i32 = arith.constant 0 : i32
    %c0_i32_0 = arith.constant 0 : i32
    %c0_i32_1 = arith.constant 0 : i32
    return %c0_i32, %c0_i32_0 : i32, i32
  }
  func.func @transform_8(%arg0: i32) -> (i32, i32) {
    %c0_i32 = arith.constant 0 : i32
    %c0_i32_0 = arith.constant 0 : i32
    %c0_i32_1 = arith.constant 0 : i32
    return %c0_i32, %c0_i32_0 : i32, i32
  }
  func.func @transform_9(%arg0: i32) -> (i32, i32) {
    %c0_i32 = arith.constant 0 : i32
    %c0_i32_0 = arith.constant 0 : i32
    return %arg0, %c0_i32 : i32, i32
  }
}

</mosaic_0001>

<llo_original>
// kernel: stock_predictor_forward.1
$region0: #{stock_predictor_forward.1}
  #allocation0 [shape = 'u32[]', space=smem, size = 0x4, offset = 0x4, fixed_abs, tag = 'smem constant byte address 0x4 - core index']
  #allocation1 [shape = 'u32[144,128]{1,0:T(1,128)}', space=vmem, size = 0x12000, scoped, tag = 'internal scratch']
  %s0 = inlined_call_operand.vmem [shape: bf16[8,128], index: 0, kind: input, shape index: {}]
  %s1 = inlined_call_operand.vmem [shape: bf16[128,128], index: 1, kind: input, shape index: {}]
  %s2 = inlined_call_operand.vmem [shape: f32[1,128], index: 2, kind: input, shape index: {}]
  %s3 = inlined_call_operand.vmem [shape: bf16[128,64], index: 3, kind: input, shape index: {}]
  %s4 = inlined_call_operand.vmem [shape: f32[1,64], index: 4, kind: input, shape index: {}]
  %s5 = inlined_call_operand.vmem [shape: bf16[64,32], index: 5, kind: input, shape index: {}]
  %s6 = inlined_call_operand.vmem [shape: f32[1,32], index: 6, kind: input, shape index: {}]
  %s7 = inlined_call_operand.vmem [shape: bf16[32,128], index: 7, kind: input, shape index: {}]
  %s8 = inlined_call_operand.vmem [shape: f32[1,128], index: 8, kind: input, shape index: {}]
  %s9 = inlined_call_operand.vmem [shape: f32[8,128], index: 9, kind: output, shape index: {}]
  %s10 = sld [smem:[#allocation0]]
  $region46: #{stock_predictor_forward.1} parent=0
    _
  %s12 = ssub.s32 1, %s10
  %s13 = scalar_select 0, %s12, %s10
  // Predicated region
  $region2: #{stock_predictor_forward.1} parent=0 // pred_check
    _
  $region3: #{stock_predictor_forward.1} parent=0 // pred_check_branch
    %15 = sbr.rel (0) target = $region5
  $region4: #{stock_predictor_forward.1} parent=0 // pred_region
    _
  $region5: #{stock_predictor_forward.1} parent=0 // pred_fallthru
    _
  // Predicated region
  $region6: #{stock_predictor_forward.1} parent=0 // pred_check
    _
  $region7: #{stock_predictor_forward.1} parent=0 // pred_check_branch
    %17 = sbr.rel (0) target = $region9
  $region8: #{stock_predictor_forward.1} parent=0 // pred_region
    _
  $region9: #{stock_predictor_forward.1} parent=0 // pred_fallthru
    _
  // Predicated region
  $region10: #{stock_predictor_forward.1} parent=0 // pred_check
    _
  $region11: #{stock_predictor_forward.1} parent=0 // pred_check_branch
    %19 = sbr.rel (0) target = $region13
  $region12: #{stock_predictor_forward.1} parent=0 // pred_region
    _
  $region13: #{stock_predictor_forward.1} parent=0 // pred_fallthru
    _
  // Predicated region
  $region14: #{stock_predictor_forward.1} parent=0 // pred_check
    _
  $region15: #{stock_predictor_forward.1} parent=0 // pred_check_branch
    %21 = sbr.rel (0) target = $region17
  $region16: #{stock_predictor_forward.1} parent=0 // pred_region
    _
  $region17: #{stock_predictor_forward.1} parent=0 // pred_fallthru
    _
  // Predicated region
  $region18: #{stock_predictor_forward.1} parent=0 // pred_check
    _
  $region19: #{stock_predictor_forward.1} parent=0 // pred_check_branch
    %23 = sbr.rel (0) target = $region21
  $region20: #{stock_predictor_forward.1} parent=0 // pred_region
    _
  $region21: #{stock_predictor_forward.1} parent=0 // pred_fallthru
    _
  // Predicated region
  $region22: #{stock_predictor_forward.1} parent=0 // pred_check
    _
  $region23: #{stock_predictor_forward.1} parent=0 // pred_check_branch
    %25 = sbr.rel (0) target = $region25
  $region24: #{stock_predictor_forward.1} parent=0 // pred_region
    _
  $region25: #{stock_predictor_forward.1} parent=0 // pred_fallthru
    _
  // Predicated region
  $region26: #{stock_predictor_forward.1} parent=0 // pred_check
    _
  $region27: #{stock_predictor_forward.1} parent=0 // pred_check_branch
    %27 = sbr.rel (0) target = $region29
  $region28: #{stock_predictor_forward.1} parent=0 // pred_region
    _
  $region29: #{stock_predictor_forward.1} parent=0 // pred_fallthru
    _
  // Predicated region
  $region30: #{stock_predictor_forward.1} parent=0 // pred_check
    _
  $region31: #{stock_predictor_forward.1} parent=0 // pred_check_branch
    %29 = sbr.rel (0) target = $region33
  $region32: #{stock_predictor_forward.1} parent=0 // pred_region
    _
  $region33: #{stock_predictor_forward.1} parent=0 // pred_fallthru
    _
  // Predicated region
  $region34: #{stock_predictor_forward.1} parent=0 // pred_check
    _
  $region35: #{stock_predictor_forward.1} parent=0 // pred_check_branch
    %31 = sbr.rel (0) target = $region37
  $region36: #{stock_predictor_forward.1} parent=0 // pred_region
    _
  $region37: #{stock_predictor_forward.1} parent=0 // pred_fallthru
    _
  %v33 = vld [vmem:[%s0] sm:$0xf]
  %v34 = vld [vmem:[%s1] sm:$0xf]
  %v35 = vld [vmem:[%s1 + $0x4] sm:$0xf]
  %v36 = vld [vmem:[%s1 + $0x8] sm:$0xf]
  %v37 = vld [vmem:[%s1 + $0xc] sm:$0xf]
  %v38 = vld [vmem:[%s1 + $0x10] sm:$0xf]
  %v39 = vld [vmem:[%s1 + $0x14] sm:$0xf]
  %v40 = vld [vmem:[%s1 + $0x18] sm:$0xf]
  %v41 = vld [vmem:[%s1 + $0x1c] sm:$0xf]
  %v42 = vld [vmem:[%s1 + $0x20] sm:$0xf]
  %v43 = vld [vmem:[%s1 + $0x24] sm:$0xf]
  %v44 = vld [vmem:[%s1 + $0x28] sm:$0xf]
  %v45 = vld [vmem:[%s1 + $0x2c] sm:$0xf]
  %v46 = vld [vmem:[%s1 + $0x30] sm:$0xf]
  %v47 = vld [vmem:[%s1 + $0x34] sm:$0xf]
  %v48 = vld [vmem:[%s1 + $0x38] sm:$0xf]
  %v49 = vld [vmem:[%s1 + $0x3c] sm:$0xf]
  %v50 = vld [vmem:[%s2] sm:$0x1]
  %v52 = vlaneseq
  %v53 = vshrl.u32 %v52, 7
  %v54 = vsub.s32 0, %v53
  %v55 = vrot.slane %v50, %v54
  %v73 = vunpack.c.l.b16 %v34
  %v74 = vunpack.c.l.b16 %v35
  %v75 = vunpack.c.l.b16 %v36
  %v76 = vunpack.c.l.b16 %v37
  %v77 = vunpack.c.l.b16 %v38
  %v78 = vunpack.c.l.b16 %v39
  %v79 = vunpack.c.l.b16 %v40
  %v80 = vunpack.c.l.b16 %v41
  %v81 = vunpack.c.l.b16 %v42
  %v82 = vunpack.c.l.b16 %v43
  %v83 = vunpack.c.l.b16 %v44
  %v84 = vunpack.c.l.b16 %v45
  %v85 = vunpack.c.l.b16 %v46
  %v86 = vunpack.c.l.b16 %v47
  %v87 = vunpack.c.l.b16 %v48
  %v88 = vunpack.c.l.b16 %v49
  %v89 = vpack.c.b16 %v74, %v73
  %v90 = vpack.c.b16 %v76, %v75
  %v91 = vpack.c.b16 %v78, %v77
  %v92 = vpack.c.b16 %v80, %v79
  %v93 = vpack.c.b16 %v82, %v81
  %v94 = vpack.c.b16 %v84, %v83
  %v95 = vpack.c.b16 %v86, %v85
  %v96 = vpack.c.b16 %v88, %v87
  %105 = vmatprep.subr.bf16.mxu0 0
  %106 = vmatpush1.bf16.msra.mxu0 %v89
  %107 = vmatprep.subr.bf16.mxu0 0
  %108 = vmatpush1.bf16.msra.mxu0 %v90
  %109 = vmatprep.subr.bf16.mxu0 0
  %110 = vmatpush1.bf16.msra.mxu0 %v91
  %111 = vmatprep.subr.bf16.mxu0 0
  %112 = vmatpush1.bf16.msra.mxu0 %v92
  %113 = vmatprep.subr.bf16.mxu0 0
  %114 = vmatpush1.bf16.msra.mxu0 %v93
  %115 = vmatprep.subr.bf16.mxu0 0
  %116 = vmatpush1.bf16.msra.mxu0 %v94
  %117 = vmatprep.subr.bf16.mxu0 0
  %118 = vmatpush1.bf16.msra.mxu0 %v95
  %119 = vmatprep.subr.bf16.mxu0 0
  %120 = vmatpush1.bf16.msra.mxu0 %v96
  %121 = vmatprep.subr.bf16.mxu0 0
  %122 = vmatpush1.bf16.msra.mxu0 0
  %123 = vmatprep.subr.bf16.mxu0 0
  %124 = vmatpush1.bf16.msra.mxu0 0
  %125 = vmatprep.subr.bf16.mxu0 0
  %126 = vmatpush1.bf16.msra.mxu0 0
  %127 = vmatprep.subr.bf16.mxu0 0
  %128 = vmatpush1.bf16.msra.mxu0 0
  %129 = vmatprep.subr.bf16.mxu0 0
  %130 = vmatpush1.bf16.msra.mxu0 0
  %131 = vmatprep.subr.bf16.mxu0 0
  %132 = vmatpush1.bf16.msra.mxu0 0
  %133 = vmatprep.subr.bf16.mxu0 0
  %134 = vmatpush1.bf16.msra.mxu0 0
  %135 = vmatprep.subr.bf16.mxu0 0
  %136 = vmatpush1.bf16.msra.mxu0 0
  %137 = vmatprep.mubr.bf16.mxu0 0
  %138 = vmatmul.mubr.bf16.gmra.mrb[0].mxu0 %v33
  %v139 = vpop.f32.mrb[0].mxu0
  %v140 = vadd.f32 %v55, %v139
  %v141 = vpop.f32.mrb[0].mxu0
  %v142 = vpop.f32.mrb[0].mxu0
  %v143 = vpop.f32.mrb[0].mxu0
  %144 = vdwg.mxu0
  %v145 = vmax.f32 %v140, 0.0
  %v146 = vpack.c.bf16 %v145, %v145
  %v147 = vld [vmem:[%s3] sm:$0xf]
  %v148 = vld [vmem:[%s3 + $0x4] sm:$0xf]
  %v149 = vld [vmem:[%s3 + $0x8] sm:$0xf]
  %v150 = vld [vmem:[%s3 + $0xc] sm:$0xf]
  %v151 = vld [vmem:[%s3 + $0x10] sm:$0xf]
  %v152 = vld [vmem:[%s3 + $0x14] sm:$0xf]
  %v153 = vld [vmem:[%s3 + $0x18] sm:$0xf]
  %v154 = vld [vmem:[%s3 + $0x1c] sm:$0xf]
  %v155 = vld [vmem:[%s3 + $0x20] sm:$0xf]
  %v156 = vld [vmem:[%s3 + $0x24] sm:$0xf]
  %v157 = vld [vmem:[%s3 + $0x28] sm:$0xf]
  %v158 = vld [vmem:[%s3 + $0x2c] sm:$0xf]
  %v159 = vld [vmem:[%s3 + $0x30] sm:$0xf]
  %v160 = vld [vmem:[%s3 + $0x34] sm:$0xf]
  %v161 = vld [vmem:[%s3 + $0x38] sm:$0xf]
  %v162 = vld [vmem:[%s3 + $0x3c] sm:$0xf]
  %v163 = vld [vmem:[%s4] sm:$0x1]
  %v165 = vlaneseq
  %v166 = vshrl.u32 %v165, 7
  %v167 = vsub.s32 0, %v166
  %v168 = vrot.slane %v163, %v167
  %v186 = vunpack.c.l.b16 %v147
  %v187 = vunpack.c.l.b16 %v148
  %v188 = vunpack.c.l.b16 %v149
  %v189 = vunpack.c.l.b16 %v150
  %v190 = vunpack.c.l.b16 %v151
  %v191 = vunpack.c.l.b16 %v152
  %v192 = vunpack.c.l.b16 %v153
  %v193 = vunpack.c.l.b16 %v154
  %v194 = vunpack.c.l.b16 %v155
  %v195 = vunpack.c.l.b16 %v156
  %v196 = vunpack.c.l.b16 %v157
  %v197 = vunpack.c.l.b16 %v158
  %v198 = vunpack.c.l.b16 %v159
  %v199 = vunpack.c.l.b16 %v160
  %v200 = vunpack.c.l.b16 %v161
  %v201 = vunpack.c.l.b16 %v162
  %v202 = vpack.c.b16 %v187, %v186
  %v203 = vpack.c.b16 %v189, %v188
  %v204 = vpack.c.b16 %v191, %v190
  %v205 = vpack.c.b16 %v193, %v192
  %v206 = vpack.c.b16 %v195, %v194
  %v207 = vpack.c.b16 %v197, %v196
  %v208 = vpack.c.b16 %v199, %v198
  %v209 = vpack.c.b16 %v201, %v200
  %218 = vmatprep.subr.bf16.mxu0 0
  %219 = vmatpush1.bf16.msra.mxu0 %v202
  %220 = vmatprep.subr.bf16.mxu0 0
  %221 = vmatpush1.bf16.msra.mxu0 %v203
  %222 = vmatprep.subr.bf16.mxu0 0
  %223 = vmatpush1.bf16.msra.mxu0 %v204
  %224 = vmatprep.subr.bf16.mxu0 0
  %225 = vmatpush1.bf16.msra.mxu0 %v205
  %226 = vmatprep.subr.bf16.mxu0 0
  %227 = vmatpush1.bf16.msra.mxu0 %v206
  %228 = vmatprep.subr.bf16.mxu0 0
  %229 = vmatpush1.bf16.msra.mxu0 %v207
  %230 = vmatprep.subr.bf16.mxu0 0
  %231 = vmatpush1.bf16.msra.mxu0 %v208
  %232 = vmatprep.subr.bf16.mxu0 0
  %233 = vmatpush1.bf16.msra.mxu0 %v209
  %234 = vmatprep.subr.bf16.mxu0 0
  %235 = vmatpush1.bf16.msra.mxu0 0
  %236 = vmatprep.subr.bf16.mxu0 0
  %237 = vmatpush1.bf16.msra.mxu0 0
  %238 = vmatprep.subr.bf16.mxu0 0
  %239 = vmatpush1.bf16.msra.mxu0 0
  %240 = vmatprep.subr.bf16.mxu0 0
  %241 = vmatpush1.bf16.msra.mxu0 0
  %242 = vmatprep.subr.bf16.mxu0 0
  %243 = vmatpush1.bf16.msra.mxu0 0
  %244 = vmatprep.subr.bf16.mxu0 0
  %245 = vmatpush1.bf16.msra.mxu0 0
  %246 = vmatprep.subr.bf16.mxu0 0
  %247 = vmatpush1.bf16.msra.mxu0 0
  %248 = vmatprep.subr.bf16.mxu0 0
  %249 = vmatpush1.bf16.msra.mxu0 0
  %250 = vmatprep.mubr.bf16.mxu0 0
  %251 = vmatmul.mubr.bf16.gmra.mrb[0].mxu0 %v146
  %v252 = vpop.f32.mrb[0].mxu0
  %v253 = vadd.f32 %v168, %v252
  %v254 = vpop.f32.mrb[0].mxu0
  %v255 = vpop.f32.mrb[0].mxu0
  %v256 = vpop.f32.mrb[0].mxu0
  %257 = vdwg.mxu0
  %v258 = vmax.f32 %v253, 0.0
  %v259 = vpack.c.bf16 %v258, %v258
  %v260 = vld [vmem:[%s5] sm:$0xf]
  %v261 = vld [vmem:[%s5 + $0x4] sm:$0xf]
  %v262 = vld [vmem:[%s5 + $0x8] sm:$0xf]
  %v263 = vld [vmem:[%s5 + $0xc] sm:$0xf]
  %v264 = vld [vmem:[%s5 + $0x10] sm:$0xf]
  %v265 = vld [vmem:[%s5 + $0x14] sm:$0xf]
  %v266 = vld [vmem:[%s5 + $0x18] sm:$0xf]
  %v267 = vld [vmem:[%s5 + $0x1c] sm:$0xf]
  %v268 = vld [vmem:[%s6] sm:$0x1]
  %v270 = vlaneseq
  %v271 = vshrl.u32 %v270, 7
  %v272 = vsub.s32 0, %v271
  %v273 = vrot.slane %v268, %v272
  %v283 = vunpack.c.l.b16 %v260
  %v284 = vunpack.c.l.b16 %v261
  %v285 = vunpack.c.l.b16 %v262
  %v286 = vunpack.c.l.b16 %v263
  %v287 = vunpack.c.l.b16 %v264
  %v288 = vunpack.c.l.b16 %v265
  %v289 = vunpack.c.l.b16 %v266
  %v290 = vunpack.c.l.b16 %v267
  %v291 = vpack.c.b16 %v284, %v283
  %v292 = vpack.c.b16 %v286, %v285
  %v293 = vpack.c.b16 %v288, %v287
  %v294 = vpack.c.b16 %v290, %v289
  %vm299 = vcmask 523264
  %v301 = vsel %vm299, %v259, 0
  %303 = vmatprep.subr.bf16.mxu0 0
  %304 = vmatpush1.bf16.msra.mxu0 %v291
  %305 = vmatprep.subr.bf16.mxu0 0
  %306 = vmatpush1.bf16.msra.mxu0 %v292
  %307 = vmatprep.subr.bf16.mxu0 0
  %308 = vmatpush1.bf16.msra.mxu0 %v293
  %309 = vmatprep.subr.bf16.mxu0 0
  %310 = vmatpush1.bf16.msra.mxu0 %v294
  %311 = vmatprep.subr.bf16.mxu0 0
  %312 = vmatpush1.bf16.msra.mxu0 0
  %313 = vmatprep.subr.bf16.mxu0 0
  %314 = vmatpush1.bf16.msra.mxu0 0
  %315 = vmatprep.subr.bf16.mxu0 0
  %316 = vmatpush1.bf16.msra.mxu0 0
  %317 = vmatprep.subr.bf16.mxu0 0
  %318 = vmatpush1.bf16.msra.mxu0 0
  %319 = vmatprep.subr.bf16.mxu0 0
  %320 = vmatpush1.bf16.msra.mxu0 0
  %321 = vmatprep.subr.bf16.mxu0 0
  %322 = vmatpush1.bf16.msra.mxu0 0
  %323 = vmatprep.subr.bf16.mxu0 0
  %324 = vmatpush1.bf16.msra.mxu0 0
  %325 = vmatprep.subr.bf16.mxu0 0
  %326 = vmatpush1.bf16.msra.mxu0 0
  %327 = vmatprep.subr.bf16.mxu0 0
  %328 = vmatpush1.bf16.msra.mxu0 0
  %329 = vmatprep.subr.bf16.mxu0 0
  %330 = vmatpush1.bf16.msra.mxu0 0
  %331 = vmatprep.subr.bf16.mxu0 0
  %332 = vmatpush1.bf16.msra.mxu0 0
  %333 = vmatprep.subr.bf16.mxu0 0
  %334 = vmatpush1.bf16.msra.mxu0 0
  %335 = vmatprep.mubr.bf16.mxu0 0
  %336 = vmatmul.mubr.bf16.gmra.mrb[0].mxu0 %v301
  %v337 = vpop.f32.mrb[0].mxu0
  %v338 = vadd.f32 %v273, %v337
  %v339 = vpop.f32.mrb[0].mxu0
  %v340 = vpop.f32.mrb[0].mxu0
  %v341 = vpop.f32.mrb[0].mxu0
  %342 = vdwg.mxu0
  %v343 = vmax.f32 %v338, 0.0
  %v344 = vpack.c.bf16 %v343, %v343
  %v345 = vld [vmem:[%s7] sm:$0xf]
  %v346 = vld [vmem:[%s7 + $0x4] sm:$0xf]
  %v347 = vld [vmem:[%s7 + $0x8] sm:$0xf]
  %v348 = vld [vmem:[%s7 + $0xc] sm:$0xf]
  %v349 = vld [vmem:[%s8] sm:$0x1]
  %v351 = vlaneseq
  %v352 = vshrl.u32 %v351, 7
  %v353 = vsub.s32 0, %v352
  %v354 = vrot.slane %v349, %v353
  %v360 = vunpack.c.l.b16 %v345
  %v361 = vunpack.c.l.b16 %v346
  %v362 = vunpack.c.l.b16 %v347
  %v363 = vunpack.c.l.b16 %v348
  %v364 = vpack.c.b16 %v361, %v360
  %v365 = vpack.c.b16 %v363, %v362
  %vm368 = vcmask 261120
  %v370 = vsel %vm368, %v344, 0
  %372 = vmatprep.subr.bf16.mxu0 0
  %373 = vmatpush1.bf16.msra.mxu0 %v364
  %374 = vmatprep.subr.bf16.mxu0 0
  %375 = vmatpush1.bf16.msra.mxu0 %v365
  %376 = vmatprep.subr.bf16.mxu0 0
  %377 = vmatpush1.bf16.msra.mxu0 0
  %378 = vmatprep.subr.bf16.mxu0 0
  %379 = vmatpush1.bf16.msra.mxu0 0
  %380 = vmatprep.subr.bf16.mxu0 0
  %381 = vmatpush1.bf16.msra.mxu0 0
  %382 = vmatprep.subr.bf16.mxu0 0
  %383 = vmatpush1.bf16.msra.mxu0 0
  %384 = vmatprep.subr.bf16.mxu0 0
  %385 = vmatpush1.bf16.msra.mxu0 0
  %386 = vmatprep.subr.bf16.mxu0 0
  %387 = vmatpush1.bf16.msra.mxu0 0
  %388 = vmatprep.subr.bf16.mxu0 0
  %389 = vmatpush1.bf16.msra.mxu0 0
  %390 = vmatprep.subr.bf16.mxu0 0
  %391 = vmatpush1.bf16.msra.mxu0 0
  %392 = vmatprep.subr.bf16.mxu0 0
  %393 = vmatpush1.bf16.msra.mxu0 0
  %394 = vmatprep.subr.bf16.mxu0 0
  %395 = vmatpush1.bf16.msra.mxu0 0
  %396 = vmatprep.subr.bf16.mxu0 0
  %397 = vmatpush1.bf16.msra.mxu0 0
  %398 = vmatprep.subr.bf16.mxu0 0
  %399 = vmatpush1.bf16.msra.mxu0 0
  %400 = vmatprep.subr.bf16.mxu0 0
  %401 = vmatpush1.bf16.msra.mxu0 0
  %402 = vmatprep.subr.bf16.mxu0 0
  %403 = vmatpush1.bf16.msra.mxu0 0
  %404 = vmatprep.mubr.bf16.mxu0 0
  %405 = vmatmul.mubr.bf16.gmra.mrb[0].mxu0 %v370
  %v406 = vpop.f32.mrb[0].mxu0
  %v407 = vadd.f32 %v354, %v406
  %v408 = vpop.f32.mrb[0].mxu0
  %v409 = vpop.f32.mrb[0].mxu0
  %v410 = vpop.f32.mrb[0].mxu0
  %411 = vdwg.mxu0
  %v412 = vxor.u32 %v407, 2147483648
  %v413 = vmul.f32 %v412, 1.442695
  %v414 = vpow.pop %v413
  %v415 = vadd.f32 %v414, 1.0
  %v416 = vrcp.pop %v415
  %v417 = vmul.f32 1.0, %v416
  %418 = vst [vmem:[%s9] sm:$0xff] %v417
  // Predicated region
  $region38: #{stock_predictor_forward.1} parent=0 // pred_check
    _
  $region39: #{stock_predictor_forward.1} parent=0 // pred_check_branch
    %420 = sbr.rel (0) target = $region41
  $region40: #{stock_predictor_forward.1} parent=0 // pred_region
    _
  $region41: #{stock_predictor_forward.1} parent=0 // pred_fallthru
    _
  // Predicated region
  $region42: #{stock_predictor_forward.1} parent=0 // pred_check
    _
  $region43: #{stock_predictor_forward.1} parent=0 // pred_check_branch
    %422 = sbr.rel (0) target = $region45
  $region44: #{stock_predictor_forward.1} parent=0 // pred_region
    _
  $region45: #{stock_predictor_forward.1} parent=0 // pred_fallthru
    _

</llo_original>
